<compile_context>
chip_gen: v6e
topology: v6e:2x2x1
jax: 0.10.0
libtpu: 0.0.40
codegen_flags: <defaults>
</compile_context>

<pallas_src>
import math
import jax
import jax.numpy as jnp
from jax.experimental import pallas as pl
from jax.experimental.pallas import tpu as pltpu


def _critic_kernel(sa_ref, w1_ref, w2_ref, w3_ref, w4_ref, hb_ref, b4_ref, out_ref):
    # sa_ref : (tb, din)            one batch tile of concat(state, action)
    # w1_ref : (din, E*hid)         packed first layer
    # w2_ref : (E*hid, E*hid)       block-diagonal
    # w3_ref : (E*hid, E*hid)       block-diagonal
    # w4_ref : (E*hid, out_cols)    block-diagonal head, zero-padded to lane-dense
    # hb_ref : (3, E*hid)           hidden-layer biases (rows = layers 1..3)
    # b4_ref : (1, out_cols)        head bias, zero-padded
    # out_ref: (tb, out_cols)
    x = sa_ref[...]

    h = jnp.dot(x, w1_ref[...], preferred_element_type=jnp.float32) + hb_ref[0:1, :]
    h = jnp.maximum(h, 0.0)

    h = jnp.dot(h, w2_ref[...], preferred_element_type=jnp.float32) + hb_ref[1:2, :]
    h = jnp.maximum(h, 0.0)

    h = jnp.dot(h, w3_ref[...], preferred_element_type=jnp.float32) + hb_ref[2:3, :]
    h = jnp.maximum(h, 0.0)

    q = jnp.dot(h, w4_ref[...], preferred_element_type=jnp.float32) + b4_ref[...]
    out_ref[...] = q.astype(out_ref.dtype)


def _block_diag(w):
    """(E, in, out) per-member weights -> (E*in, E*out) block-diagonal matrix."""
    e, hi, ho = w.shape
    eye = jnp.eye(e, dtype=w.dtype)
    return jnp.einsum("eio,ef->eifo", w, eye).reshape(e * hi, e * ho)


def _pack_params(params, out_cols):
    """Repack per-ensemble params into lane-folded form.
    In a real setup this would be done once at init, not per forward call."""
    w1, b1, w2, b2, w3, b3, w4, b4 = params
    E, din, hid = w1.shape
    adim = w4.shape[2]

    w1p = jnp.transpose(w1, (1, 0, 2)).reshape(din, E * hid)      # (din, E*hid)
    w2p = _block_diag(w2)                                         # (E*hid, E*hid)
    w3p = _block_diag(w3)                                         # (E*hid, E*hid)
    w4p = _block_diag(w4)                                         # (E*hid, E*adim)

    pad = out_cols - E * adim
    if pad:
        w4p = jnp.pad(w4p, ((0, 0), (0, pad)))

    hb = jnp.stack([b1.reshape(-1), b2.reshape(-1), b3.reshape(-1)], axis=0)  # (3, E*hid)
    b4p = b4.reshape(1, E * adim)
    if pad:
        b4p = jnp.pad(b4p, ((0, 0), (0, pad)))
    return w1p, w2p, w3p, w4p, hb, b4p


def vectorized_critic_forward(state, action, params):
    """state: (B, state_dim), action: (B, action_dim).
    Returns q_values: (num_critics, B, action_dim)."""
    w1 = params[0]
    w4 = params[6]
    E, din, hid = w1.shape
    adim = w4.shape[2]
    B = state.shape[0]

    # Lane-dense output width (multiple of 128).
    out_cols = ((E * adim + 127) // 128) * 128

    sa = jnp.concatenate([state, action], axis=-1).astype(jnp.float32)  # (B, din)

    # Batch tiling: weights stay resident across batch tiles.
    tb = 128 if B >= 128 else ((B + 7) // 8) * 8
    b_pad = ((B + tb - 1) // tb) * tb
    if b_pad != B:
        sa = jnp.pad(sa, ((0, b_pad - B), (0, 0)))
    nbt = b_pad // tb

    w1p, w2p, w3p, w4p, hb, b4p = _pack_params(params, out_cols)

    def resident(shape):
        # Same block for every batch tile -> loaded once, kept in VMEM.
        return pl.BlockSpec(shape, lambda i: (0, 0))

    out = pl.pallas_call(
        _critic_kernel,
        out_shape=jax.ShapeDtypeStruct((b_pad, out_cols), jnp.float32),
        grid_spec=pltpu.PrefetchScalarGridSpec(
            num_scalar_prefetch=0,
            grid=(nbt,),
            in_specs=[
                pl.BlockSpec((tb, din), lambda i: (i, 0)),   # state_action (batch-tiled)
                resident((din, E * hid)),                    # W1 packed
                resident((E * hid, E * hid)),                # W2 block-diag
                resident((E * hid, E * hid)),                # W3 block-diag
                resident((E * hid, out_cols)),               # W4 block-diag (padded)
                resident((3, E * hid)),                      # hidden biases
                resident((1, out_cols)),                     # head bias (padded)
            ],
            out_specs=pl.BlockSpec((tb, out_cols), lambda i: (i, 0)),
        ),
        compiler_params=pltpu.CompilerParams(
            dimension_semantics=("parallel",)),
    )(sa, w1p, w2p, w3p, w4p, hb, b4p)

    q = out[:B, : E * adim].reshape(B, E, adim)
    return jnp.transpose(q, (1, 0, 2))                        # (E, B, adim)


def init_params(key, state_dim, action_dim, hidden_dim, num_critics):
    """Deterministic synthetic init mimicking VectorizedCritic.__init__:
       - hidden layer weights: kaiming-uniform-style U(-1/sqrt(fan_in), 1/sqrt(fan_in))
       - hidden layer biases: constant 0.1
       - final layer weight & bias: U(-0.003, 0.003)."""
    din = state_dim + action_dim
    ks = jax.random.split(key, 8)

    def wuni(k, shape, fan_in):
        bound = 1.0 / math.sqrt(fan_in)
        return jax.random.uniform(k, shape, jnp.float32, -bound, bound)

    w1 = wuni(ks[0], (num_critics, din, hidden_dim), din)
    b1 = jnp.full((num_critics, 1, hidden_dim), 0.1, jnp.float32)
    w2 = wuni(ks[1], (num_critics, hidden_dim, hidden_dim), hidden_dim)
    b2 = jnp.full((num_critics, 1, hidden_dim), 0.1, jnp.float32)
    w3 = wuni(ks[2], (num_critics, hidden_dim, hidden_dim), hidden_dim)
    b3 = jnp.full((num_critics, 1, hidden_dim), 0.1, jnp.float32)
    w4 = jax.random.uniform(ks[3], (num_critics, hidden_dim, action_dim),
                            jnp.float32, -0.003, 0.003)
    b4 = jax.random.uniform(ks[4], (num_critics, 1, action_dim),
                            jnp.float32, -0.003, 0.003)
    return (w1, b1, w2, b2, w3, b3, w4, b4)


def reference_forward(state, action, params):
    """Pure-JAX reference replicating the PyTorch forward semantics."""
    w1, b1, w2, b2, w3, b3, w4, b4 = params
    E = w1.shape[0]
    sa = jnp.concatenate([state, action], axis=-1)
    x = jnp.broadcast_to(sa[None], (E,) + sa.shape)
    h = jax.nn.relu(jnp.einsum("ebi,eio->ebo", x, w1) + b1)
    h = jax.nn.relu(jnp.einsum("ebi,eio->ebo", h, w2) + b2)
    h = jax.nn.relu(jnp.einsum("ebi,eio->ebo", h, w3) + b3)
    return jnp.einsum("ebi,eio->ebo", h, w4) + b4


if __name__ == "__main__":
    state_dim, action_dim, hidden_dim, num_critics = 12, 4, 32, 4
    batch = 8

    key = jax.random.PRNGKey(0)
    k_s, k_a, k_p = jax.random.split(key, 3)
    state = jax.random.normal(k_s, (batch, state_dim), jnp.float32)
    action = jax.random.normal(k_a, (batch, action_dim), jnp.float32)
    params = init_params(k_p, state_dim, action_dim, hidden_dim, num_critics)

    q = vectorized_critic_forward(state, action, params)
    q = jax.block_until_ready(q)

    q_ref = reference_forward(state, action, params)
    assert q.shape == (num_critics, batch, action_dim)
    assert jnp.allclose(q, q_ref, atol=1e-5, rtol=1e-5)

    print("KERNEL_OK")
</pallas_src>

<mosaic_0001>
module attributes {stable_mosaic.version = 11 : i64} {
  func.func @_critic_kernel(%arg0: i32, %arg1: memref<8x16xf32, #tpu.memory_space<vmem>>, %arg2: memref<16x128xf32, #tpu.memory_space<vmem>>, %arg3: memref<128x128xf32, #tpu.memory_space<vmem>>, %arg4: memref<128x128xf32, #tpu.memory_space<vmem>>, %arg5: memref<128x128xf32, #tpu.memory_space<vmem>>, %arg6: memref<3x128xf32, #tpu.memory_space<vmem>>, %arg7: memref<1x128xf32, #tpu.memory_space<vmem>>, %arg8: memref<8x128xf32, #tpu.memory_space<vmem>>) attributes {dimension_semantics = [#tpu.dimension_semantics<parallel>], iteration_bounds = array<i64: 1>, scalar_prefetch = 0 : i64, scratch_operands = 0 : i64, tpu.core_type = #tpu.core_type<tc>, window_params = [{transform_indices = @transform_0, window_bounds = array<i64: 8, 16>}, {pipeline_mode = #tpu.pipeline_mode<synchronous>, transform_indices = @transform_1, window_bounds = array<i64: 16, 128>}, {pipeline_mode = #tpu.pipeline_mode<synchronous>, transform_indices = @transform_2, window_bounds = array<i64: 128, 128>}, {pipeline_mode = #tpu.pipeline_mode<synchronous>, transform_indices = @transform_3, window_bounds = array<i64: 128, 128>}, {pipeline_mode = #tpu.pipeline_mode<synchronous>, transform_indices = @transform_4, window_bounds = array<i64: 128, 128>}, {pipeline_mode = #tpu.pipeline_mode<synchronous>, transform_indices = @transform_5, window_bounds = array<i64: 3, 128>}, {pipeline_mode = #tpu.pipeline_mode<synchronous>, transform_indices = @transform_6, window_bounds = array<i64: 1, 128>}, {transform_indices = @transform_7, window_bounds = array<i64: 8, 128>}]} {
    %c0 = arith.constant 0 : index
    %c0_0 = arith.constant 0 : index
    %0 = vector.load %arg1[%c0, %c0_0] : memref<8x16xf32, #tpu.memory_space<vmem>>, vector<8x16xf32>
    %c0_1 = arith.constant 0 : index
    %c0_2 = arith.constant 0 : index
    %1 = vector.load %arg2[%c0_1, %c0_2] : memref<16x128xf32, #tpu.memory_space<vmem>>, vector<16x128xf32>
    %cst = arith.constant dense<0.000000e+00> : vector<8x128xf32>
    %2 = tpu.matmul %0, %1, %cst {dimension_numbers = #tpu.dot_dimension_numbers<[1], [0], [0], [1], [0, 0, 1, 1], [], []>} : vector<8x16xf32>, vector<16x128xf32>, vector<8x128xf32> -> vector<8x128xf32>
    %c0_3 = arith.constant 0 : index
    %c0_4 = arith.constant 0 : index
    %3 = vector.load %arg6[%c0_3, %c0_4] : memref<3x128xf32, #tpu.memory_space<vmem>>, vector<1x128xf32>
    %4 = vector.broadcast %3 : vector<1x128xf32> to vector<8x128xf32>
    %5 = arith.addf %2, %4 : vector<8x128xf32>
    %cst_5 = arith.constant 0.000000e+00 : f32
    %6 = vector.broadcast %cst_5 : f32 to vector<8x128xf32>
    %7 = arith.maximumf %5, %6 : vector<8x128xf32>
    %c0_6 = arith.constant 0 : index
    %c0_7 = arith.constant 0 : index
    %8 = vector.load %arg3[%c0_6, %c0_7] : memref<128x128xf32, #tpu.memory_space<vmem>>, vector<128x128xf32>
    %cst_8 = arith.constant dense<0.000000e+00> : vector<8x128xf32>
    %9 = tpu.matmul %7, %8, %cst_8 {dimension_numbers = #tpu.dot_dimension_numbers<[1], [0], [0], [1], [0, 0, 1, 1], [], []>} : vector<8x128xf32>, vector<128x128xf32>, vector<8x128xf32> -> vector<8x128xf32>
    %c1 = arith.constant 1 : index
    %c0_9 = arith.constant 0 : index
    %10 = vector.load %arg6[%c1, %c0_9] : memref<3x128xf32, #tpu.memory_space<vmem>>, vector<1x128xf32>
    %11 = vector.broadcast %10 : vector<1x128xf32> to vector<8x128xf32>
    %12 = arith.addf %9, %11 : vector<8x128xf32>
    %cst_10 = arith.constant 0.000000e+00 : f32
    %13 = vector.broadcast %cst_10 : f32 to vector<8x128xf32>
    %14 = arith.maximumf %12, %13 : vector<8x128xf32>
    %c0_11 = arith.constant 0 : index
    %c0_12 = arith.constant 0 : index
    %15 = vector.load %arg4[%c0_11, %c0_12] : memref<128x128xf32, #tpu.memory_space<vmem>>, vector<128x128xf32>
    %cst_13 = arith.constant dense<0.000000e+00> : vector<8x128xf32>
    %16 = tpu.matmul %14, %15, %cst_13 {dimension_numbers = #tpu.dot_dimension_numbers<[1], [0], [0], [1], [0, 0, 1, 1], [], []>} : vector<8x128xf32>, vector<128x128xf32>, vector<8x128xf32> -> vector<8x128xf32>
    %c2 = arith.constant 2 : index
    %c0_14 = arith.constant 0 : index
    %17 = vector.load %arg6[%c2, %c0_14] : memref<3x128xf32, #tpu.memory_space<vmem>>, vector<1x128xf32>
    %18 = vector.broadcast %17 : vector<1x128xf32> to vector<8x128xf32>
    %19 = arith.addf %16, %18 : vector<8x128xf32>
    %cst_15 = arith.constant 0.000000e+00 : f32
    %20 = vector.broadcast %cst_15 : f32 to vector<8x128xf32>
    %21 = arith.maximumf %19, %20 : vector<8x128xf32>
    %c0_16 = arith.constant 0 : index
    %c0_17 = arith.constant 0 : index
    %22 = vector.load %arg5[%c0_16, %c0_17] : memref<128x128xf32, #tpu.memory_space<vmem>>, vector<128x128xf32>
    %cst_18 = arith.constant dense<0.000000e+00> : vector<8x128xf32>
    %23 = tpu.matmul %21, %22, %cst_18 {dimension_numbers = #tpu.dot_dimension_numbers<[1], [0], [0], [1], [0, 0, 1, 1], [], []>} : vector<8x128xf32>, vector<128x128xf32>, vector<8x128xf32> -> vector<8x128xf32>
    %c0_19 = arith.constant 0 : index
    %c0_20 = arith.constant 0 : index
    %24 = vector.load %arg7[%c0_19, %c0_20] : memref<1x128xf32, #tpu.memory_space<vmem>>, vector<1x128xf32>
    %25 = vector.broadcast %24 : vector<1x128xf32> to vector<8x128xf32>
    %26 = arith.addf %23, %25 : vector<8x128xf32>
    %c0_21 = arith.constant 0 : index
    %c0_22 = arith.constant 0 : index
    %27 = vector.load %arg8[%c0_21, %c0_22] : memref<8x128xf32, #tpu.memory_space<vmem>>, vector<8x128xf32>
    tpu.vector_store %arg8[%c0_21, %c0_22], %26 {strides = array<i32>} : memref<8x128xf32, #tpu.memory_space<vmem>>, vector<8x128xf32>,
    return
  }
  func.func @transform_0(%arg0: i32) -> (i32, i32) {
    %c0_i32 = arith.constant 0 : i32
    %c0_i32_0 = arith.constant 0 : i32
    return %arg0, %c0_i32 : i32, i32
  }
  func.func @transform_1(%arg0: i32) -> (i32, i32) {
    %c0_i32 = arith.constant 0 : i32
    %c0_i32_0 = arith.constant 0 : i32
    %c0_i32_1 = arith.constant 0 : i32
    return %c0_i32, %c0_i32_0 : i32, i32
  }
  func.func @transform_2(%arg0: i32) -> (i32, i32) {
    %c0_i32 = arith.constant 0 : i32
    %c0_i32_0 = arith.constant 0 : i32
    %c0_i32_1 = arith.constant 0 : i32
    return %c0_i32, %c0_i32_0 : i32, i32
  }
  func.func @transform_3(%arg0: i32) -> (i32, i32) {
    %c0_i32 = arith.constant 0 : i32
    %c0_i32_0 = arith.constant 0 : i32
    %c0_i32_1 = arith.constant 0 : i32
    return %c0_i32, %c0_i32_0 : i32, i32
  }
  func.func @transform_4(%arg0: i32) -> (i32, i32) {
    %c0_i32 = arith.constant 0 : i32
    %c0_i32_0 = arith.constant 0 : i32
    %c0_i32_1 = arith.constant 0 : i32
    return %c0_i32, %c0_i32_0 : i32, i32
  }
  func.func @transform_5(%arg0: i32) -> (i32, i32) {
    %c0_i32 = arith.constant 0 : i32
    %c0_i32_0 = arith.constant 0 : i32
    %c0_i32_1 = arith.constant 0 : i32
    return %c0_i32, %c0_i32_0 : i32, i32
  }
  func.func @transform_6(%arg0: i32) -> (i32, i32) {
    %c0_i32 = arith.constant 0 : i32
    %c0_i32_0 = arith.constant 0 : i32
    %c0_i32_1 = arith.constant 0 : i32
    return %c0_i32, %c0_i32_0 : i32, i32
  }
  func.func @transform_7(%arg0: i32) -> (i32, i32) {
    %c0_i32 = arith.constant 0 : i32
    %c0_i32_0 = arith.constant 0 : i32
    return %arg0, %c0_i32 : i32, i32
  }
}

</mosaic_0001>

<llo_original>
// kernel: tpu_custom_call.1
$region0: #{tpu_custom_call.1}
  #allocation0 [shape = 'u32[]', space=smem, size = 0x4, offset = 0x4, fixed_abs, tag = 'smem constant byte address 0x4 - core index']
  #allocation1 [shape = 'u32[144,128]{1,0:T(1,128)}', space=vmem, size = 0x12000, scoped, tag = 'internal scratch']
  %s0 = inlined_call_operand.hbm [shape: f32[8,16], index: 0, kind: input, shape index: {}]
  %s1 = inlined_call_operand.hbm [shape: f32[16,128], index: 1, kind: input, shape index: {}]
  %s2 = inlined_call_operand.hbm [shape: f32[128,128], index: 2, kind: input, shape index: {}]
  %s3 = inlined_call_operand.hbm [shape: f32[128,128], index: 3, kind: input, shape index: {}]
  %s4 = inlined_call_operand.hbm [shape: f32[128,128], index: 4, kind: input, shape index: {}]
  %s5 = inlined_call_operand.vmem [shape: f32[3,128], index: 5, kind: input, shape index: {}]
  %s6 = inlined_call_operand.vmem [shape: f32[1,128], index: 6, kind: input, shape index: {}]
  %s7 = inlined_call_operand.hbm [shape: f32[8,128], index: 7, kind: output, shape index: {}]
  %s8 = sld [smem:[#allocation0]]
  $region58: #{tpu_custom_call.1} parent=0
    _
  %s10 = ssub.s32 1, %s8
  %s11 = scalar_select 0, %s10, %s8
  $region1: #{tpu_custom_call.1} parent=0
    #allocation2 [shape = 'u8[4096]{0}', space=vmem, size = 0x1000, scoped, tag = 'input window, operand 0, single buffered']
    #allocation3 [shape = 's32[1]{0}', space=sflag, size = 0x4, scoped, tag = 'scoped memory for tpu_custom_call.1']
    #allocation4 [shape = 's32[1]{0}', space=sflag, size = 0x4, scoped, tag = 'scoped memory for tpu_custom_call.1']
    #allocation5 [shape = 'u8[8192]{0}', space=vmem, size = 0x2000, scoped, tag = 'input window, operand 1, single buffered']
    #allocation6 [shape = 's32[1]{0}', space=sflag, size = 0x4, scoped, tag = 'scoped memory for tpu_custom_call.1']
    #allocation7 [shape = 'u8[65536]{0}', space=vmem, size = 0x10000, scoped, tag = 'input window, operand 2, single buffered']
    #allocation8 [shape = 'u8[65536]{0}', space=vmem, size = 0x10000, scoped, tag = 'input window, operand 3, single buffered']
    #allocation9 [shape = 's32[1]{0}', space=sflag, size = 0x4, scoped, tag = 'scoped memory for tpu_custom_call.1']
    #allocation10 [shape = 'u8[65536]{0}', space=vmem, size = 0x10000, scoped, tag = 'input window, operand 4, single buffered']
    #allocation11 [shape = 'u8[4096]{0}', space=vmem, size = 0x1000, scoped, tag = 'output window, operand 0, single buffered']
    %12 = vsyncpa [#allocation3], 0
    %13 = vsyncpa [#allocation6], 0
    %14 = vsyncpa [#allocation9], 0
    %15 = vsyncpa [#allocation4], 0
    // Predicated region
    $region2: #{tpu_custom_call.1} parent=1 // pred_check
      _
    $region3: #{tpu_custom_call.1} parent=1 // pred_check_branch
      %17 = sbr.rel (0) target = $region5
    $region4: #{tpu_custom_call.1} parent=1 // pred_region
      %s19 = ssub.s32 128, 128
      %20 = vsyncadd [#allocation3], %s19
      %s22 = sshll.u32 [#allocation2], 4
      %s23 = int_to_ptr.vmem [resolvable:$true] %s22
      %25 = dma.hbm_to_vmem [thread:$0]  %s0, 128, %s23, [#allocation3]
    $region5: #{tpu_custom_call.1} parent=1 // pred_fallthru
      _
    // Predicated region
    $region6: #{tpu_custom_call.1} parent=1 // pred_check
      _
    $region7: #{tpu_custom_call.1} parent=1 // pred_check_branch
      %27 = sbr.rel (0) target = $region9
    $region8: #{tpu_custom_call.1} parent=1 // pred_region
      %s29 = ssub.s32 256, 256
      %30 = vsyncadd [#allocation6], %s29
      %s31 = sshll.u32 [#allocation5], 4
      %s32 = int_to_ptr.vmem [resolvable:$true] %s31
      %37 = dma.hbm_to_vmem [thread:$0]  %s1, 256, %s32, [#allocation6], 128, 128, 8
    $region9: #{tpu_custom_call.1} parent=1 // pred_fallthru
      _
    // Predicated region
    $region10: #{tpu_custom_call.1} parent=1 // pred_check
      _
    $region11: #{tpu_custom_call.1} parent=1 // pred_check_branch
      %39 = sbr.rel (0) target = $region13
    $region12: #{tpu_custom_call.1} parent=1 // pred_region
      %s41 = ssub.s32 2048, 2048
      %42 = vsyncadd [#allocation6], %s41
      %s43 = sshll.u32 [#allocation7], 4
      %s44 = int_to_ptr.vmem [resolvable:$true] %s43
      %49 = dma.hbm_to_vmem [thread:$0]  %s2, 2048, %s44, [#allocation6], 128, 128, 8
    $region13: #{tpu_custom_call.1} parent=1 // pred_fallthru
      _
    // Predicated region
    $region14: #{tpu_custom_call.1} parent=1 // pred_check
      _
    $region15: #{tpu_custom_call.1} parent=1 // pred_check_branch
      %51 = sbr.rel (0) target = $region17
    $region16: #{tpu_custom_call.1} parent=1 // pred_region
      %s53 = ssub.s32 2048, 2048
      %54 = vsyncadd [#allocation9], %s53
      %s55 = sshll.u32 [#allocation8], 4
      %s56 = int_to_ptr.vmem [resolvable:$true] %s55
      %61 = dma.hbm_to_vmem [thread:$0]  %s3, 2048, %s56, [#allocation9], 128, 128, 8
    $region17: #{tpu_custom_call.1} parent=1 // pred_fallthru
      _
    // Predicated region
    $region18: #{tpu_custom_call.1} parent=1 // pred_check
      _
    $region19: #{tpu_custom_call.1} parent=1 // pred_check_branch
      %63 = sbr.rel (0) target = $region21
    $region20: #{tpu_custom_call.1} parent=1 // pred_region
      %s65 = ssub.s32 2048, 2048
      %66 = vsyncadd [#allocation9], %s65
      %s67 = sshll.u32 [#allocation10], 4
      %s68 = int_to_ptr.vmem [resolvable:$true] %s67
      %73 = dma.hbm_to_vmem [thread:$0]  %s4, 2048, %s68, [#allocation9], 128, 128, 8
    $region21: #{tpu_custom_call.1} parent=1 // pred_fallthru
      _
    // Predicated region
    $region22: #{tpu_custom_call.1} parent=1 // pred_check
      _
    $region23: #{tpu_custom_call.1} parent=1 // pred_check_branch
      %75 = sbr.rel (0) target = $region25
    $region24: #{tpu_custom_call.1} parent=1 // pred_region
      _
    $region25: #{tpu_custom_call.1} parent=1 // pred_fallthru
      _
    // Predicated region
    $region26: #{tpu_custom_call.1} parent=1 // pred_check
      _
    $region27: #{tpu_custom_call.1} parent=1 // pred_check_branch
      %77 = sbr.rel (0) target = $region29
    $region28: #{tpu_custom_call.1} parent=1 // pred_region
      _
    $region29: #{tpu_custom_call.1} parent=1 // pred_fallthru
      _
    // Predicated region
    $region30: #{tpu_custom_call.1} parent=1 // pred_check
      _
    $region31: #{tpu_custom_call.1} parent=1 // pred_check_branch
      %79 = sbr.rel (0) target = $region33
    $region32: #{tpu_custom_call.1} parent=1 // pred_region
      %80 = dma.done [#allocation3], 128
    $region33: #{tpu_custom_call.1} parent=1 // pred_fallthru
      _
    // Predicated region
    $region34: #{tpu_custom_call.1} parent=1 // pred_check
      _
    $region35: #{tpu_custom_call.1} parent=1 // pred_check_branch
      %82 = sbr.rel (0) target = $region37
    $region36: #{tpu_custom_call.1} parent=1 // pred_region
      %83 = dma.done [#allocation6], 256
    $region37: #{tpu_custom_call.1} parent=1 // pred_fallthru
      _
    // Predicated region
    $region38: #{tpu_custom_call.1} parent=1 // pred_check
      _
    $region39: #{tpu_custom_call.1} parent=1 // pred_check_branch
      %85 = sbr.rel (0) target = $region41
    $region40: #{tpu_custom_call.1} parent=1 // pred_region
      %86 = dma.done [#allocation6], 2048
    $region41: #{tpu_custom_call.1} parent=1 // pred_fallthru
      _
    // Predicated region
    $region42: #{tpu_custom_call.1} parent=1 // pred_check
      _
    $region43: #{tpu_custom_call.1} parent=1 // pred_check_branch
      %88 = sbr.rel (0) target = $region45
    $region44: #{tpu_custom_call.1} parent=1 // pred_region
      %89 = dma.done [#allocation9], 2048
    $region45: #{tpu_custom_call.1} parent=1 // pred_fallthru
      _
    // Predicated region
    $region46: #{tpu_custom_call.1} parent=1 // pred_check
      _
    $region47: #{tpu_custom_call.1} parent=1 // pred_check_branch
      %91 = sbr.rel (0) target = $region49
    $region48: #{tpu_custom_call.1} parent=1 // pred_region
      %92 = dma.done [#allocation9], 2048
    $region49: #{tpu_custom_call.1} parent=1 // pred_fallthru
      _
    %v93 = vld [vmem:[#allocation2] sm:$0xff]
    %v94 = vld [vmem:[#allocation5] sm:$0xff]
    %v95 = vld [vmem:[#allocation5 + $0x8] sm:$0xff]
    %v96 = vld [vmem:[%s5] sm:$0x1]
    %v97 = vlaneseq
    %v98 = vshrl.u32 %v97, 7
    %v99 = vsub.s32 0, %v98
    %v100 = vrot.slane %v96, %v99
    %vm101 = vcmask 130048
    %v103 = vsel %vm101, %v93, 0
    %105 = vmatprep.subr.mxu0 0.0
    %106 = vmatpush1.msra.mxu0 0.0
    %107 = vmatprep.subr.mxu0 0.0
    %108 = vmatpush1.msra.mxu0 0.0
    %109 = vmatprep.subr.mxu0 0.0
    %110 = vmatpush1.msra.mxu0 0.0
    %111 = vmatprep.subr.mxu0 0.0
    %112 = vmatpush1.msra.mxu0 0.0
    %113 = vmatprep.subr.mxu0 0.0
    %114 = vmatpush1.msra.mxu0 0.0
    %115 = vmatprep.subr.mxu0 0.0
    %116 = vmatpush1.msra.mxu0 0.0
    %117 = vmatprep.subr.mxu0 0.0
    %118 = vmatpush1.msra.mxu0 0.0
    %119 = vmatprep.subr.mxu0 0.0
    %120 = vmatpush1.msra.mxu0 0.0
    %121 = vmatprep.subr.mxu0 0.0
    %122 = vmatpush1.msra.mxu0 0.0
    %123 = vmatprep.subr.mxu0 0.0
    %124 = vmatpush1.msra.mxu0 0.0
    %125 = vmatprep.subr.mxu0 0.0
    %126 = vmatpush1.msra.mxu0 0.0
    %127 = vmatprep.subr.mxu0 0.0
    %128 = vmatpush1.msra.mxu0 0.0
    %129 = vmatprep.subr.mxu0 0.0
    %130 = vmatpush1.msra.mxu0 0.0
    %131 = vmatprep.subr.mxu0 0.0
    %132 = vmatpush1.msra.mxu0 0.0
    %133 = vmatprep.subr.mxu0 0.0
    %134 = vmatpush1.msra.mxu0 %v95
    %135 = vmatprep.subr.mxu0 0.0
    %136 = vmatpush1.msra.mxu0 %v94
    %137 = vmatprep.subr.mxu0 0.0
    %138 = vmatpush2.msra.mxu0 0.0
    %139 = vmatprep.subr.mxu0 0.0
    %140 = vmatpush2.msra.mxu0 0.0
    %141 = vmatprep.subr.mxu0 0.0
    %142 = vmatpush2.msra.mxu0 0.0
    %143 = vmatprep.subr.mxu0 0.0
    %144 = vmatpush2.msra.mxu0 0.0
    %145 = vmatprep.subr.mxu0 0.0
    %146 = vmatpush2.msra.mxu0 0.0
    %147 = vmatprep.subr.mxu0 0.0
    %148 = vmatpush2.msra.mxu0 0.0
    %149 = vmatprep.subr.mxu0 0.0
    %150 = vmatpush2.msra.mxu0 0.0
    %151 = vmatprep.subr.mxu0 0.0
    %152 = vmatpush2.msra.mxu0 0.0
    %153 = vmatprep.subr.mxu0 0.0
    %154 = vmatpush2.msra.mxu0 0.0
    %155 = vmatprep.subr.mxu0 0.0
    %156 = vmatpush2.msra.mxu0 0.0
    %157 = vmatprep.subr.mxu0 0.0
    %158 = vmatpush2.msra.mxu0 0.0
    %159 = vmatprep.subr.mxu0 0.0
    %160 = vmatpush2.msra.mxu0 0.0
    %161 = vmatprep.subr.mxu0 0.0
    %162 = vmatpush2.msra.mxu0 0.0
    %163 = vmatprep.subr.mxu0 0.0
    %164 = vmatpush2.msra.mxu0 0.0
    %165 = vmatprep.subr.mxu0 0.0
    %166 = vmatpush2.msra.mxu0 0.0
    %167 = vmatprep.subr.mxu0 0.0
    %168 = vmatpush2.msra.mxu0 0.0
    %169 = vmatprep.mubr.f32.mxu0 0.0
    %170 = vmatmul.mubr.f32.gmra.mxu0 %v103
    %v171 = vpop.f32.mrf.mxu0
    %v172 = vadd.f32 %v100, %v171
    %v173 = vpop.f32.mrf.mxu0
    %174 = vdwg.mxu0
    %v175 = vmax.f32 %v172, 0.0
    %v176 = vld [vmem:[#allocation7] sm:$0xff]
    %v177 = vld [vmem:[#allocation7 + $0x8] sm:$0xff]
    %v178 = vld [vmem:[#allocation7 + $0x10] sm:$0xff]
    %v179 = vld [vmem:[#allocation7 + $0x18] sm:$0xff]
    %v180 = vld [vmem:[#allocation7 + $0x20] sm:$0xff]
    %v181 = vld [vmem:[#allocation7 + $0x28] sm:$0xff]
    %v182 = vld [vmem:[#allocation7 + $0x30] sm:$0xff]
    %v183 = vld [vmem:[#allocation7 + $0x38] sm:$0xff]
    %v184 = vld [vmem:[#allocation7 + $0x40] sm:$0xff]
    %v185 = vld [vmem:[#allocation7 + $0x48] sm:$0xff]
    %v186 = vld [vmem:[#allocation7 + $0x50] sm:$0xff]
    %v187 = vld [vmem:[#allocation7 + $0x58] sm:$0xff]
    %v188 = vld [vmem:[#allocation7 + $0x60] sm:$0xff]
    %v189 = vld [vmem:[#allocation7 + $0x68] sm:$0xff]
    %v190 = vld [vmem:[#allocation7 + $0x70] sm:$0xff]
    %v191 = vld [vmem:[#allocation7 + $0x78] sm:$0xff]
    %v192 = vld [vmem:[%s5 + $0x1] sm:$0x1]
    %v193 = vlaneseq
    %v194 = vshrl.u32 %v193, 7
    %v195 = vsub.s32 0, %v194
    %v196 = vrot.slane %v192, %v195
    %197 = vmatprep.subr.mxu0 0.0
    %198 = vmatpush1.msra.mxu0 %v191
    %199 = vmatprep.subr.mxu0 0.0
    %200 = vmatpush1.msra.mxu0 %v190
    %201 = vmatprep.subr.mxu0 0.0
    %202 = vmatpush1.msra.mxu0 %v189
    %203 = vmatprep.subr.mxu0 0.0
    %204 = vmatpush1.msra.mxu0 %v188
    %205 = vmatprep.subr.mxu0 0.0
    %206 = vmatpush1.msra.mxu0 %v187
    %207 = vmatprep.subr.mxu0 0.0
    %208 = vmatpush1.msra.mxu0 %v186
    %209 = vmatprep.subr.mxu0 0.0
    %210 = vmatpush1.msra.mxu0 %v185
    %211 = vmatprep.subr.mxu0 0.0
    %212 = vmatpush1.msra.mxu0 %v184
    %213 = vmatprep.subr.mxu0 0.0
    %214 = vmatpush1.msra.mxu0 %v183
    %215 = vmatprep.subr.mxu0 0.0
    %216 = vmatpush1.msra.mxu0 %v182
    %217 = vmatprep.subr.mxu0 0.0
    %218 = vmatpush1.msra.mxu0 %v181
    %219 = vmatprep.subr.mxu0 0.0
    %220 = vmatpush1.msra.mxu0 %v180
    %221 = vmatprep.subr.mxu0 0.0
    %222 = vmatpush1.msra.mxu0 %v179
    %223 = vmatprep.subr.mxu0 0.0
    %224 = vmatpush1.msra.mxu0 %v178
    %225 = vmatprep.subr.mxu0 0.0
    %226 = vmatpush1.msra.mxu0 %v177
    %227 = vmatprep.subr.mxu0 0.0
    %228 = vmatpush1.msra.mxu0 %v176
    %229 = vmatprep.subr.mxu0 0.0
    %230 = vmatpush2.msra.mxu0 0.0
    %231 = vmatprep.subr.mxu0 0.0
    %232 = vmatpush2.msra.mxu0 0.0
    %233 = vmatprep.subr.mxu0 0.0
    %234 = vmatpush2.msra.mxu0 0.0
    %235 = vmatprep.subr.mxu0 0.0
    %236 = vmatpush2.msra.mxu0 0.0
    %237 = vmatprep.subr.mxu0 0.0
    %238 = vmatpush2.msra.mxu0 0.0
    %239 = vmatprep.subr.mxu0 0.0
    %240 = vmatpush2.msra.mxu0 0.0
    %241 = vmatprep.subr.mxu0 0.0
    %242 = vmatpush2.msra.mxu0 0.0
    %243 = vmatprep.subr.mxu0 0.0
    %244 = vmatpush2.msra.mxu0 0.0
    %245 = vmatprep.subr.mxu0 0.0
    %246 = vmatpush2.msra.mxu0 0.0
    %247 = vmatprep.subr.mxu0 0.0
    %248 = vmatpush2.msra.mxu0 0.0
    %249 = vmatprep.subr.mxu0 0.0
    %250 = vmatpush2.msra.mxu0 0.0
    %251 = vmatprep.subr.mxu0 0.0
    %252 = vmatpush2.msra.mxu0 0.0
    %253 = vmatprep.subr.mxu0 0.0
    %254 = vmatpush2.msra.mxu0 0.0
    %255 = vmatprep.subr.mxu0 0.0
    %256 = vmatpush2.msra.mxu0 0.0
    %257 = vmatprep.subr.mxu0 0.0
    %258 = vmatpush2.msra.mxu0 0.0
    %259 = vmatprep.subr.mxu0 0.0
    %260 = vmatpush2.msra.mxu0 0.0
    %261 = vmatprep.mubr.f32.mxu0 0.0
    %262 = vmatmul.mubr.f32.gmra.mxu0 %v175
    %v263 = vpop.f32.mrf.mxu0
    %v264 = vadd.f32 %v196, %v263
    %v265 = vpop.f32.mrf.mxu0
    %266 = vdwg.mxu0
    %v267 = vmax.f32 %v264, 0.0
    %v268 = vld [vmem:[#allocation8] sm:$0xff]
    %v269 = vld [vmem:[#allocation8 + $0x8] sm:$0xff]
    %v270 = vld [vmem:[#allocation8 + $0x10] sm:$0xff]
    %v271 = vld [vmem:[#allocation8 + $0x18] sm:$0xff]
    %v272 = vld [vmem:[#allocation8 + $0x20] sm:$0xff]
    %v273 = vld [vmem:[#allocation8 + $0x28] sm:$0xff]
    %v274 = vld [vmem:[#allocation8 + $0x30] sm:$0xff]
    %v275 = vld [vmem:[#allocation8 + $0x38] sm:$0xff]
    %v276 = vld [vmem:[#allocation8 + $0x40] sm:$0xff]
    %v277 = vld [vmem:[#allocation8 + $0x48] sm:$0xff]
    %v278 = vld [vmem:[#allocation8 + $0x50] sm:$0xff]
    %v279 = vld [vmem:[#allocation8 + $0x58] sm:$0xff]
    %v280 = vld [vmem:[#allocation8 + $0x60] sm:$0xff]
    %v281 = vld [vmem:[#allocation8 + $0x68] sm:$0xff]
    %v282 = vld [vmem:[#allocation8 + $0x70] sm:$0xff]
    %v283 = vld [vmem:[#allocation8 + $0x78] sm:$0xff]
    %v284 = vld [vmem:[%s5 + $0x2] sm:$0x1]
    %v285 = vlaneseq
    %v286 = vshrl.u32 %v285, 7
    %v287 = vsub.s32 0, %v286
    %v288 = vrot.slane %v284, %v287
    %289 = vmatprep.subr.mxu0 0.0
    %290 = vmatpush1.msra.mxu0 %v283
    %291 = vmatprep.subr.mxu0 0.0
    %292 = vmatpush1.msra.mxu0 %v282
    %293 = vmatprep.subr.mxu0 0.0
    %294 = vmatpush1.msra.mxu0 %v281
    %295 = vmatprep.subr.mxu0 0.0
    %296 = vmatpush1.msra.mxu0 %v280
    %297 = vmatprep.subr.mxu0 0.0
    %298 = vmatpush1.msra.mxu0 %v279
    %299 = vmatprep.subr.mxu0 0.0
    %300 = vmatpush1.msra.mxu0 %v278
    %301 = vmatprep.subr.mxu0 0.0
    %302 = vmatpush1.msra.mxu0 %v277
    %303 = vmatprep.subr.mxu0 0.0
    %304 = vmatpush1.msra.mxu0 %v276
    %305 = vmatprep.subr.mxu0 0.0
    %306 = vmatpush1.msra.mxu0 %v275
    %307 = vmatprep.subr.mxu0 0.0
    %308 = vmatpush1.msra.mxu0 %v274
    %309 = vmatprep.subr.mxu0 0.0
    %310 = vmatpush1.msra.mxu0 %v273
    %311 = vmatprep.subr.mxu0 0.0
    %312 = vmatpush1.msra.mxu0 %v272
    %313 = vmatprep.subr.mxu0 0.0
    %314 = vmatpush1.msra.mxu0 %v271
    %315 = vmatprep.subr.mxu0 0.0
    %316 = vmatpush1.msra.mxu0 %v270
    %317 = vmatprep.subr.mxu0 0.0
    %318 = vmatpush1.msra.mxu0 %v269
    %319 = vmatprep.subr.mxu0 0.0
    %320 = vmatpush1.msra.mxu0 %v268
    %321 = vmatprep.subr.mxu0 0.0
    %322 = vmatpush2.msra.mxu0 0.0
    %323 = vmatprep.subr.mxu0 0.0
    %324 = vmatpush2.msra.mxu0 0.0
    %325 = vmatprep.subr.mxu0 0.0
    %326 = vmatpush2.msra.mxu0 0.0
    %327 = vmatprep.subr.mxu0 0.0
    %328 = vmatpush2.msra.mxu0 0.0
    %329 = vmatprep.subr.mxu0 0.0
    %330 = vmatpush2.msra.mxu0 0.0
    %331 = vmatprep.subr.mxu0 0.0
    %332 = vmatpush2.msra.mxu0 0.0
    %333 = vmatprep.subr.mxu0 0.0
    %334 = vmatpush2.msra.mxu0 0.0
    %335 = vmatprep.subr.mxu0 0.0
    %336 = vmatpush2.msra.mxu0 0.0
    %337 = vmatprep.subr.mxu0 0.0
    %338 = vmatpush2.msra.mxu0 0.0
    %339 = vmatprep.subr.mxu0 0.0
    %340 = vmatpush2.msra.mxu0 0.0
    %341 = vmatprep.subr.mxu0 0.0
    %342 = vmatpush2.msra.mxu0 0.0
    %343 = vmatprep.subr.mxu0 0.0
    %344 = vmatpush2.msra.mxu0 0.0
    %345 = vmatprep.subr.mxu0 0.0
    %346 = vmatpush2.msra.mxu0 0.0
    %347 = vmatprep.subr.mxu0 0.0
    %348 = vmatpush2.msra.mxu0 0.0
    %349 = vmatprep.subr.mxu0 0.0
    %350 = vmatpush2.msra.mxu0 0.0
    %351 = vmatprep.subr.mxu0 0.0
    %352 = vmatpush2.msra.mxu0 0.0
    %353 = vmatprep.mubr.f32.mxu0 0.0
    %354 = vmatmul.mubr.f32.gmra.mxu0 %v267
    %v355 = vpop.f32.mrf.mxu0
    %v356 = vadd.f32 %v288, %v355
    %v357 = vpop.f32.mrf.mxu0
    %358 = vdwg.mxu0
    %v359 = vmax.f32 %v356, 0.0
    %v360 = vld [vmem:[#allocation10] sm:$0xff]
    %v361 = vld [vmem:[#allocation10 + $0x8] sm:$0xff]
    %v362 = vld [vmem:[#allocation10 + $0x10] sm:$0xff]
    %v363 = vld [vmem:[#allocation10 + $0x18] sm:$0xff]
    %v364 = vld [vmem:[#allocation10 + $0x20] sm:$0xff]
    %v365 = vld [vmem:[#allocation10 + $0x28] sm:$0xff]
    %v366 = vld [vmem:[#allocation10 + $0x30] sm:$0xff]
    %v367 = vld [vmem:[#allocation10 + $0x38] sm:$0xff]
    %v368 = vld [vmem:[#allocation10 + $0x40] sm:$0xff]
    %v369 = vld [vmem:[#allocation10 + $0x48] sm:$0xff]
    %v370 = vld [vmem:[#allocation10 + $0x50] sm:$0xff]
    %v371 = vld [vmem:[#allocation10 + $0x58] sm:$0xff]
    %v372 = vld [vmem:[#allocation10 + $0x60] sm:$0xff]
    %v373 = vld [vmem:[#allocation10 + $0x68] sm:$0xff]
    %v374 = vld [vmem:[#allocation10 + $0x70] sm:$0xff]
    %v375 = vld [vmem:[#allocation10 + $0x78] sm:$0xff]
    %v376 = vld [vmem:[%s6] sm:$0x1]
    %v378 = vlaneseq
    %v379 = vshrl.u32 %v378, 7
    %v380 = vsub.s32 0, %v379
    %v381 = vrot.slane %v376, %v380
    %383 = vmatprep.subr.mxu0 0.0
    %384 = vmatpush1.msra.mxu0 %v375
    %385 = vmatprep.subr.mxu0 0.0
    %386 = vmatpush1.msra.mxu0 %v374
    %387 = vmatprep.subr.mxu0 0.0
    %388 = vmatpush1.msra.mxu0 %v373
    %389 = vmatprep.subr.mxu0 0.0
    %390 = vmatpush1.msra.mxu0 %v372
    %391 = vmatprep.subr.mxu0 0.0
    %392 = vmatpush1.msra.mxu0 %v371
    %393 = vmatprep.subr.mxu0 0.0
    %394 = vmatpush1.msra.mxu0 %v370
    %395 = vmatprep.subr.mxu0 0.0
    %396 = vmatpush1.msra.mxu0 %v369
    %397 = vmatprep.subr.mxu0 0.0
    %398 = vmatpush1.msra.mxu0 %v368
    %399 = vmatprep.subr.mxu0 0.0
    %400 = vmatpush1.msra.mxu0 %v367
    %401 = vmatprep.subr.mxu0 0.0
    %402 = vmatpush1.msra.mxu0 %v366
    %403 = vmatprep.subr.mxu0 0.0
    %404 = vmatpush1.msra.mxu0 %v365
    %405 = vmatprep.subr.mxu0 0.0
    %406 = vmatpush1.msra.mxu0 %v364
    %407 = vmatprep.subr.mxu0 0.0
    %408 = vmatpush1.msra.mxu0 %v363
    %409 = vmatprep.subr.mxu0 0.0
    %410 = vmatpush1.msra.mxu0 %v362
    %411 = vmatprep.subr.mxu0 0.0
    %412 = vmatpush1.msra.mxu0 %v361
    %413 = vmatprep.subr.mxu0 0.0
    %414 = vmatpush1.msra.mxu0 %v360
    %415 = vmatprep.subr.mxu0 0.0
    %416 = vmatpush2.msra.mxu0 0.0
    %417 = vmatprep.subr.mxu0 0.0
    %418 = vmatpush2.msra.mxu0 0.0
    %419 = vmatprep.subr.mxu0 0.0
    %420 = vmatpush2.msra.mxu0 0.0
    %421 = vmatprep.subr.mxu0 0.0
    %422 = vmatpush2.msra.mxu0 0.0
    %423 = vmatprep.subr.mxu0 0.0
    %424 = vmatpush2.msra.mxu0 0.0
    %425 = vmatprep.subr.mxu0 0.0
    %426 = vmatpush2.msra.mxu0 0.0
    %427 = vmatprep.subr.mxu0 0.0
    %428 = vmatpush2.msra.mxu0 0.0
    %429 = vmatprep.subr.mxu0 0.0
    %430 = vmatpush2.msra.mxu0 0.0
    %431 = vmatprep.subr.mxu0 0.0
    %432 = vmatpush2.msra.mxu0 0.0
    %433 = vmatprep.subr.mxu0 0.0
    %434 = vmatpush2.msra.mxu0 0.0
    %435 = vmatprep.subr.mxu0 0.0
    %436 = vmatpush2.msra.mxu0 0.0
    %437 = vmatprep.subr.mxu0 0.0
    %438 = vmatpush2.msra.mxu0 0.0
    %439 = vmatprep.subr.mxu0 0.0
    %440 = vmatpush2.msra.mxu0 0.0
    %441 = vmatprep.subr.mxu0 0.0
    %442 = vmatpush2.msra.mxu0 0.0
    %443 = vmatprep.subr.mxu0 0.0
    %444 = vmatpush2.msra.mxu0 0.0
    %445 = vmatprep.subr.mxu0 0.0
    %446 = vmatpush2.msra.mxu0 0.0
    %447 = vmatprep.mubr.f32.mxu0 0.0
    %448 = vmatmul.mubr.f32.gmra.mxu0 %v359
    %v449 = vpop.f32.mrf.mxu0
    %v450 = vadd.f32 %v381, %v449
    %v451 = vpop.f32.mrf.mxu0
    %452 = vdwg.mxu0
    %453 = vst [vmem:[#allocation11] sm:$0xff] %v450
    // Predicated region
    $region50: #{tpu_custom_call.1} parent=1 // pred_check
      _
    $region51: #{tpu_custom_call.1} parent=1 // pred_check_branch
      %455 = sbr.rel (0) target = $region53
    $region52: #{tpu_custom_call.1} parent=1 // pred_region
      %s457 = ssub.s32 128, 128
      %458 = vsyncadd [#allocation4], %s457
      %s460 = sshll.u32 [#allocation11], 4
      %s461 = int_to_ptr.vmem [resolvable:$true] %s460
      %463 = dma.vmem_to_hbm [thread:$0]  %s461, 128, %s7, [#allocation4]
    $region53: #{tpu_custom_call.1} parent=1 // pred_fallthru
      _
    // Predicated region
    $region54: #{tpu_custom_call.1} parent=1 // pred_check
      _
    $region55: #{tpu_custom_call.1} parent=1 // pred_check_branch
      %465 = sbr.rel (0) target = $region57
    $region56: #{tpu_custom_call.1} parent=1 // pred_region
      %466 = dma.done [#allocation4], 128
    $region57: #{tpu_custom_call.1} parent=1 // pred_fallthru
      _
    %467 = vsyncpa [#allocation3], 1
    %468 = vsyncpa [#allocation6], 1
    %469 = vsyncpa [#allocation9], 1
    %470 = vsyncpa [#allocation4], 1

</llo_original>
